<compile_context>
chip_gen: v6e
topology: v6e:2x2x1
jax: 0.10.0
libtpu: 0.0.40
codegen_flags: <defaults>
</compile_context>

<pallas_src>
import functools
import numpy as np
import jax
import jax.numpy as jnp
from jax.experimental import pallas as pl
from jax.experimental.pallas import tpu as pltpu

_SUB = 8  # sublane granularity for block row counts


def _round_up(x, m):
    return (x + m - 1) // m * m


# ----------------------------- Pallas kernel -------------------------------

def _fused_conv_kernel(*refs, taps, row_stride, m_rows, use_bn, act, glu,
                       has_res, has_gate, inv_count, r_valid, last_phase):
    """Fused conv (height-tap matmuls) + BatchNorm + activation/GLU
       (+ residual average) (+ SE gate).

    refs: x (R_in, K) f32 | w (T, K, Co) bf16 | [gb (2|4, Co) f32]
          [res (M, Co) f32] | [gate (M, Co) f32] | out (M, Co) f32
          [stat (2|4, Co) f32 VMEM scratch]
    """
    i = 0
    x_ref = refs[i]; i += 1
    w_ref = refs[i]; i += 1
    gb_ref = None
    if use_bn:
        gb_ref = refs[i]; i += 1
    res_ref = None
    if has_res:
        res_ref = refs[i]; i += 1
    gate_ref = None
    if has_gate:
        gate_ref = refs[i]; i += 1
    o_ref = refs[i]; i += 1
    stat_ref = refs[i] if use_bn else None

    phase = pl.program_id(0)
    xb = x_ref[...].astype(jnp.bfloat16)          # bf16 MXU operands, cast once
    cout = w_ref.shape[2]

    def conv_half(tap0):
        acc = jnp.zeros((m_rows, cout), jnp.float32)
        for t in range(taps):
            lhs = xb[t * row_stride:t * row_stride + m_rows, :]
            acc = acc + jnp.dot(lhs, w_ref[tap0 + t],
                                preferred_element_type=jnp.float32)
        return acc

    y = conv_half(0)
    yg = conv_half(taps) if glu else None

    if use_bn:
        @pl.when((phase == 0) & (pl.program_id(1) == 0))
        def _():
            stat_ref[...] = jnp.zeros_like(stat_ref)

        @pl.when(phase == 0)
        def _():
            if r_valid < m_rows:           # mask padded garbage rows (rare)
                rid = jax.lax.broadcasted_iota(jnp.int32, (m_rows, 1), 0)
                sel = rid < r_valid
                ys = jnp.where(sel, y, 0.0)
                ygs = jnp.where(sel, yg, 0.0) if glu else None
            else:
                ys, ygs = y, yg
            stat_ref[0:1, :] += jnp.sum(ys, axis=0, keepdims=True)
            stat_ref[1:2, :] += jnp.sum(ys * ys, axis=0, keepdims=True)
            if glu:
                stat_ref[2:3, :] += jnp.sum(ygs, axis=0, keepdims=True)
                stat_ref[3:4, :] += jnp.sum(ygs * ygs, axis=0, keepdims=True)

    @pl.when(phase == last_phase)
    def _():
        def bn(v, r0):
            if not use_bn:
                return v
            mean = stat_ref[r0:r0 + 1, :] * inv_count
            var = jnp.maximum(stat_ref[r0 + 1:r0 + 2, :] * inv_count
                              - mean * mean, 0.0)
            v = (v - mean) * jax.lax.rsqrt(var + 1e-5)
            return v * gb_ref[r0:r0 + 1, :] + gb_ref[r0 + 1:r0 + 2, :]

        if glu:
            v = bn(y, 0) * jax.nn.sigmoid(bn(yg, 2))
        else:
            v = bn(y, 0)
            if act == "lrelu":
                v = jnp.where(v >= 0, v, 0.2 * v)
            elif act == "swish":
                v = v * jax.nn.sigmoid(v)
            elif act == "sigmoid":
                v = jax.nn.sigmoid(v)
        if has_res:
            v = (v + res_ref[...]) * 0.5
        if has_gate:
            v = v * gate_ref[...]
        o_ref[...] = v.astype(o_ref.dtype)


# ----------------------------- pallas_call wrapper --------------------------

def fused_conv(x_nhwc, w_oihw, *, stride=1, pad=0, use_bn=False,
               gamma=None, beta=None, act="none", residual=None, gate=None):
    """Conv2d (PyTorch OIHW weight, bias-free) fused with training-mode BN
    (exact batch stats via two-phase grid), activation/GLU, the DownBlockComp
    residual average and the SEBlock channel gate."""
    x_nhwc = x_nhwc.astype(jnp.float32)
    N, H, W, Cin = x_nhwc.shape
    Cout, Cin_w, KH, KW = w_oihw.shape
    assert Cin_w == Cin

    xp = jnp.pad(x_nhwc, ((0, 0), (pad, pad), (pad, pad), (0, 0))) if pad else x_nhwc
    Hp, Wp = H + 2 * pad, W + 2 * pad

    if stride == 2:
        # space-to-depth: stride-2 KHxKW conv -> stride-1 (KH/2)x(KW/2) conv
        assert KH % 2 == 0 and KW % 2 == 0 and Hp % 2 == 0 and Wp % 2 == 0
        xp = xp.reshape(N, Hp // 2, 2, Wp // 2, 2, Cin)
        xp = xp.transpose(0, 1, 3, 2, 4, 5).reshape(N, Hp // 2, Wp // 2, 4 * Cin)
        wt = w_oihw.reshape(Cout, Cin, KH // 2, 2, KW // 2, 2)
        wt = wt.transpose(2, 4, 3, 5, 1, 0)              # (a, b, dy, dx, c, o)
        KH_e, KW_e, Cin_e = KH // 2, KW // 2, 4 * Cin
        Hp_e, Wp_e = Hp // 2, Wp // 2
        w_taps = wt.reshape(KH_e, KW_e * Cin_e, Cout)
    else:
        assert stride == 1
        KH_e, KW_e, Cin_e = KH, KW, Cin
        Hp_e, Wp_e = Hp, Wp
        w_taps = jnp.transpose(w_oihw, (2, 3, 1, 0)).reshape(KH, KW * Cin, Cout)

    Ho, Wo = Hp_e - KH_e + 1, Wp_e - KW_e + 1
    glu = (act == "glu")
    assert (not glu) or Cout % 2 == 0
    cout_eff = Cout // 2 if glu else Cout

    # --- blocking path -------------------------------------------------------
    if KH_e == 1 and KW_e == 1:
        # 1x1 conv: one whole-batch matmul (rf heads, SE excite).
        slab = xp.reshape(N * Ho * Wo, Cin_e)
        taps, row_stride = 1, 0
        n_blocks, m_rows, r_in_rows, r_valid = 1, N * Ho * Wo, N * Ho * Wo, N * Ho * Wo
    elif Ho == 1 and Wo == 1:
        # kernel covers the whole padded input: batch-as-rows matmul (SE squeeze).
        slab = xp.reshape(N, Hp_e * Wp_e * Cin_e)
        w_taps = w_taps.reshape(1, KH_e * KW_e * Cin_e, Cout)
        taps, row_stride = 1, 0
        n_blocks, m_rows, r_in_rows, r_valid = 1, N, N, N
    else:
        # general path: KW unfold in glue, KH taps in-kernel, per-image blocks.
        xu = jnp.stack([xp[:, :, kx:kx + Wo, :] for kx in range(KW_e)], axis=3)
        xu = xu.reshape(N, Hp_e * Wo, KW_e * Cin_e)
        r_valid = Ho * Wo
        m_rows = _round_up(r_valid, _SUB)
        r_in_rows = _round_up(max(Hp_e * Wo, (KH_e - 1) * Wo + m_rows), _SUB)
        if r_in_rows > Hp_e * Wo:
            xu = jnp.pad(xu, ((0, 0), (0, r_in_rows - Hp_e * Wo), (0, 0)))
        slab = xu.reshape(N * r_in_rows, KW_e * Cin_e)
        taps, row_stride = KH_e, Wo
        n_blocks = N

    if glu:   # two lane-aligned halves -> no mid-lane slicing in the kernel
        w_taps = jnp.concatenate(
            [w_taps[:, :, :cout_eff], w_taps[:, :, cout_eff:]], axis=0)
    w_all = w_taps.astype(jnp.bfloat16)

    operands = [slab, w_all]
    in_specs = [
        pl.BlockSpec((r_in_rows, slab.shape[1]), lambda p, n: (n, 0)),
        pl.BlockSpec(w_all.shape, lambda p, n: (0, 0, 0)),
    ]
    if use_bn:
        g = jnp.ones((Cout,), jnp.float32) if gamma is None else gamma.astype(jnp.float32)
        b = jnp.zeros((Cout,), jnp.float32) if beta is None else beta.astype(jnp.float32)
        if glu:
            gb = jnp.stack([g[:cout_eff], b[:cout_eff], g[cout_eff:], b[cout_eff:]])
        else:
            gb = jnp.stack([g, b])
        operands.append(gb)
        in_specs.append(pl.BlockSpec(gb.shape, lambda p, n: (0, 0)))

    rows_per_img = m_rows if n_blocks == N else m_rows // N

    def _to_out_slab(t2):                          # (N, Ho*Wo, C) -> row slab
        if rows_per_img > Ho * Wo:
            t2 = jnp.pad(t2, ((0, 0), (0, rows_per_img - Ho * Wo), (0, 0)))
        return t2.reshape(n_blocks * m_rows, t2.shape[-1])

    has_res = residual is not None
    if has_res:
        res2 = residual.astype(jnp.float32).reshape(N, Ho * Wo, cout_eff)
        operands.append(_to_out_slab(res2))
        in_specs.append(pl.BlockSpec((m_rows, cout_eff), lambda p, n: (n, 0)))
    has_gate = gate is not None
    if has_gate:
        g2 = jnp.broadcast_to(gate.astype(jnp.float32).reshape(N, 1, cout_eff),
                              (N, Ho * Wo, cout_eff))
        operands.append(_to_out_slab(g2))
        in_specs.append(pl.BlockSpec((m_rows, cout_eff), lambda p, n: (n, 0)))

    num_phases = 2 if use_bn else 1
    grid = (num_phases, n_blocks)
    sem = ("arbitrary", "arbitrary") if use_bn else ("arbitrary", "parallel")
    scratch = ([pltpu.VMEM((4 if glu else 2, cout_eff), jnp.float32)]
               if use_bn else [])

    # per-call VMEM budget (double-buffered blocks), clamped for v7x's 64 MiB
    blk_bytes = (r_in_rows * slab.shape[1]
                 + m_rows * cout_eff * (1 + has_res + has_gate)) * 4 \
        + w_all.size * 2
    vmem_limit = int(min(max(4 * blk_bytes, 32 * 2 ** 20), 48 * 2 ** 20))

    kernel = functools.partial(
        _fused_conv_kernel, taps=taps, row_stride=row_stride, m_rows=m_rows,
        use_bn=use_bn, act=act, glu=glu, has_res=has_res, has_gate=has_gate,
        inv_count=1.0 / float(n_blocks * r_valid), r_valid=r_valid,
        last_phase=num_phases - 1)

    out = pl.pallas_call(
        kernel,
        grid=grid,
        in_specs=in_specs,
        out_specs=pl.BlockSpec((m_rows, cout_eff), lambda p, n: (n, 0)),
        out_shape=jax.ShapeDtypeStruct((n_blocks * m_rows, cout_eff), jnp.float32),
        scratch_shapes=scratch,
        compiler_params=pltpu.CompilerParams(
            dimension_semantics=sem, vmem_limit_bytes=vmem_limit),
    )(*operands)

    out = out.reshape(N, rows_per_img, cout_eff)[:, :Ho * Wo, :]
    return out.reshape(N, Ho, Wo, cout_eff)


# ----------------------------- plain-JAX glue ops ---------------------------

def adaptive_avg_pool(x, out_hw):
    N, H, W, C = x.shape
    oh, ow = out_hw
    assert H % oh == 0 and W % ow == 0
    return x.reshape(N, oh, H // oh, ow, W // ow, C).mean(axis=(2, 4))


def upsample_nearest2x(x):
    return jnp.repeat(jnp.repeat(x, 2, axis=1), 2, axis=2)


def interp_nearest(x, out_hw):
    N, H, W, C = x.shape
    Ho, Wo = out_hw
    hi = jnp.clip(jnp.floor(jnp.arange(Ho) * (H / Ho)).astype(jnp.int32), 0, H - 1)
    wi = jnp.clip(jnp.floor(jnp.arange(Wo) * (W / Wo)).astype(jnp.int32), 0, W - 1)
    return x[:, hi][:, :, wi]


def spectral_normalize(w, key, n_iter=1, eps=1e-12):
    # TODO(synk): PyTorch's spectral_norm keeps a persistent power-iteration
    # vector `u` updated each forward; here a fresh u / single iteration is
    # used at parameter-build time only.
    cout = w.shape[0]
    wm = w.reshape(cout, -1)
    u = jax.random.normal(key, (cout,), jnp.float32)
    u = u / (jnp.linalg.norm(u) + eps)
    v = None
    for _ in range(n_iter):
        v = wm.T @ u
        v = v / (jnp.linalg.norm(v) + eps)
        u = wm @ v
        u = u / (jnp.linalg.norm(u) + eps)
    sigma = u @ (wm @ v)
    return w / sigma


class ParamFactory:
    def __init__(self, key):
        self.key = key

    def conv(self, cout, cin, kh, kw):
        self.key, k1, k2 = jax.random.split(self.key, 3)
        fan_in = cin * kh * kw
        w = jax.random.normal(k1, (cout, cin, kh, kw), jnp.float32) / np.sqrt(fan_in)
        return spectral_normalize(w, k2)

    def bn(self, c):
        return {"gamma": jnp.ones((c,), jnp.float32),
                "beta": jnp.zeros((c,), jnp.float32)}


# ----------------------------- Discriminator --------------------------------

class PallasDiscriminator:
    def __init__(self, sizes, ndf=64, nc=3, channels_out=1,
                 final_kernel=(1, 1), key=None):
        self.ndf = ndf
        self.nc = nc
        self.sizes = [tuple(s) for s in sizes]
        self.im_size = self.sizes[0]
        possible = [2 ** i for i in range(1, 12)]
        nfc = {}
        for s in self.sizes:
            val = 64 * ndf // int(np.round(np.sqrt(np.prod(s))))
            nfc[s] = possible[int(np.argmin([abs(val - v) for v in possible]))]
        self.nfc = nfc

        pf = ParamFactory(key)
        P = {}
        P["down_from_big.conv"] = pf.conv(nfc[self.im_size], nc, 3, 3)
        for i in range(len(self.sizes) - 1):
            cs, ns = self.sizes[i], self.sizes[i + 1]
            ci, co = nfc[cs], nfc[ns]
            name = "down_to_" + "x".join(str(v) for v in ns)
            P[name] = {"m_conv1": pf.conv(co, ci, 4, 4), "m_bn1": pf.bn(co),
                       "m_conv2": pf.conv(co, co, 3, 3), "m_bn2": pf.bn(co),
                       "d_conv": pf.conv(co, ci, 1, 1), "d_bn": pf.bn(co)}
            if i >= len(self.sizes) // 2:
                smaller = self.sizes[i - len(self.sizes) // 2]
                se_name = "se_to_" + "x".join(str(v) for v in ns)
                P[se_name] = {"conv1": pf.conv(co, nfc[smaller], 4, 4),
                              "conv2": pf.conv(co, co, 1, 1)}
        P["rf_big"] = pf.conv(channels_out, nfc[self.sizes[-1]],
                              final_kernel[0], final_kernel[1])
        small_sizes = self.sizes[1:]
        P["down_from_small.conv"] = pf.conv(nfc[small_sizes[0]], nc, 3, 3)
        for i in range(len(small_sizes) - 1):
            cs, ns = small_sizes[i], small_sizes[i + 1]
            name = "smaller_down_to_" + "x".join(str(v) for v in ns)
            P[name] = {"conv": pf.conv(nfc[ns], nfc[cs], 4, 4), "bn": pf.bn(nfc[ns])}
        P["rf_small"] = pf.conv(channels_out, nfc[small_sizes[-1]],
                                final_kernel[0], final_kernel[1])
        P["decoder_big"] = self._build_decoder(pf, nfc, self.sizes[-1],
                                               self.sizes[1], nfc[self.sizes[-1]], nc)
        P["decoder_small"] = self._build_decoder(pf, nfc, self.sizes[-1],
                                                 self.sizes[1], nfc[self.sizes[-1]], nc)
        P["decoder_part"] = self._build_decoder(pf, nfc, self.sizes[-1],
                                                self.sizes[1], nfc[self.sizes[-2]], nc)
        self.params = P

    def _build_decoder(self, pf, nfc, in_res, out_res, nfc_in, nc):
        dec_nfc = {k: v // 2 for k, v in nfc.items()
                   if k[0] >= in_res[0] and k[1] >= in_res[1]
                   and k[0] <= out_res[0] and k[1] <= out_res[1]}
        szs = sorted(dec_nfc.keys(), key=lambda x: x[0])
        layers = []
        cur = nfc_in
        for i in range(len(szs) - 1):
            nxt = dec_nfc[szs[i + 1]]
            layers.append({"conv": pf.conv(nxt * 2, cur, 3, 3), "bn": pf.bn(nxt * 2)})
            cur = nxt
        return {"up": layers, "final": pf.conv(nc, cur, 3, 3)}

    # ----- blocks -----
    def _down_block_comp(self, p, feat, gate=None):
        m = fused_conv(feat, p["m_conv1"], stride=2, pad=1, use_bn=True,
                       gamma=p["m_bn1"]["gamma"], beta=p["m_bn1"]["beta"], act="lrelu")
        m = fused_conv(m, p["m_conv2"], stride=1, pad=1, use_bn=True,
                       gamma=p["m_bn2"]["gamma"], beta=p["m_bn2"]["beta"], act="lrelu")
        # direct branch: AvgPool(2,2) + 1x1 conv == single 2x2/stride-2 conv (w/4);
        # the (main+direct)/2 average and the SE gate are fused as epilogues.
        w_d = jnp.tile(p["d_conv"], (1, 1, 2, 2)) * 0.25
        return fused_conv(feat, w_d, stride=2, pad=0, use_bn=True,
                          gamma=p["d_bn"]["gamma"], beta=p["d_bn"]["beta"],
                          act="lrelu", residual=m, gate=gate)

    def _se_gate(self, p, feat_small):
        pooled = adaptive_avg_pool(feat_small, (4, 4))
        y = fused_conv(pooled, p["conv1"], stride=1, pad=0, act="swish")
        return fused_conv(y, p["conv2"], stride=1, pad=0, act="sigmoid")   # (N,1,1,C)

    def _down_block(self, p, feat):
        return fused_conv(feat, p["conv"], stride=2, pad=1, use_bn=True,
                          gamma=p["bn"]["gamma"], beta=p["bn"]["beta"], act="lrelu")

    def _decoder(self, p, feat):
        x = feat
        for blk in p["up"]:
            x = upsample_nearest2x(x)
            x = fused_conv(x, blk["conv"], stride=1, pad=1, use_bn=True,
                           gamma=blk["bn"]["gamma"], beta=blk["bn"]["beta"], act="glu")
        return fused_conv(x, p["final"], stride=1, pad=1, act="none")

    # ----- forward -----
    def forward(self, imgs, label, part=None):
        if not isinstance(imgs, (list, tuple)):
            x = jnp.transpose(imgs, (0, 2, 3, 1)).astype(jnp.float32)   # NCHW -> NHWC
            imgs = [interp_nearest(x, self.im_size), interp_nearest(x, self.sizes[1])]
        else:
            imgs = [jnp.transpose(im, (0, 2, 3, 1)).astype(jnp.float32) for im in imgs]
        P = self.params
        feat = fused_conv(imgs[0], P["down_from_big.conv"], stride=1, pad=1, act="lrelu")
        feats = [feat]
        for i in range(len(self.sizes) - 1):
            ns = self.sizes[i + 1]
            gate = None
            if i >= len(self.sizes) // 2:
                small_index = i - len(self.sizes) // 2
                gate = self._se_gate(P["se_to_" + "x".join(str(v) for v in ns)],
                                     feats[small_index])
            feat = self._down_block_comp(P["down_to_" + "x".join(str(v) for v in ns)],
                                         feat, gate=gate)
            feats.append(feat)

        feat_small = fused_conv(imgs[1], P["down_from_small.conv"],
                                stride=1, pad=1, act="lrelu")
        small_sizes = self.sizes[1:]
        for i in range(len(small_sizes) - 1):
            ns = small_sizes[i + 1]
            feat_small = self._down_block(
                P["smaller_down_to_" + "x".join(str(v) for v in ns)], feat_small)

        rf_0 = fused_conv(feat, P["rf_big"], stride=1, pad=0, act="none")
        rf_1 = fused_conv(feat_small, P["rf_small"], stride=1, pad=0, act="none")
        # NHWC (N,H,W,1) flatten equals NCHW (N,1,H,W).view(-1)
        rf = jnp.concatenate([rf_0.reshape(-1), rf_1.reshape(-1)])

        if label == "real":
            rec_big = self._decoder(P["decoder_big"], feat)
            rec_small = self._decoder(P["decoder_small"], feat_small)
            fc = feats[-2]
            ch, cw = fc.shape[1] // 2, fc.shape[2] // 2
            assert part is not None
            if part == 0:
                crop = fc[:, :ch, :cw, :]
            elif part == 1:
                crop = fc[:, :ch, cw:, :]
            elif part == 2:
                crop = fc[:, ch:, :cw, :]
            else:
                crop = fc[:, ch:, cw:, :]
            rec_part = self._decoder(P["decoder_part"], crop)
            to_nchw = lambda t: jnp.transpose(t, (0, 3, 1, 2))
            return rf, [to_nchw(rec_big), to_nchw(rec_small), to_nchw(rec_part)]
        return rf


# ----------------------------- main ------------------------------------------

if __name__ == "__main__":
    key = jax.random.PRNGKey(0)
    k_params, k_img = jax.random.split(key)
    sizes = [(16, 16), (8, 8), (4, 4)]        # small config; nfc = {16x16:8, 8x8:16, 4x4:32}
    disc = PallasDiscriminator(sizes, ndf=2, nc=3, channels_out=1,
                               final_kernel=(1, 1), key=k_params)
    imgs = jax.random.normal(k_img, (2, 3, 16, 16), jnp.float32)   # NCHW, like PyTorch

    rf_fake = disc.forward(imgs, label="fake")
    rf_real, recs = disc.forward(imgs, label="real", part=0)

    jax.block_until_ready(rf_fake)
    jax.block_until_ready(rf_real)
    for r in recs:
        jax.block_until_ready(r)

    assert rf_fake.shape == (64,)            # 2*4*4 (rf_big) + 2*4*4 (rf_small)
    assert rf_real.shape == (64,)
    assert recs[0].shape == (2, 3, 8, 8)
    assert recs[1].shape == (2, 3, 8, 8)
    assert recs[2].shape == (2, 3, 8, 8)
    assert bool(jnp.all(jnp.isfinite(rf_fake))) and bool(jnp.all(jnp.isfinite(rf_real)))
    print("KERNEL_OK")
</pallas_src>

<mosaic_0001>
module attributes {stable_mosaic.version = 11 : i64} {
  func.func @_fused_conv_kernel(%arg0: i32, %arg1: i32, %arg2: memref<288x9xf32, #tpu.memory_space<vmem>>, %arg3: memref<3x9x8xbf16, #tpu.memory_space<vmem>>, %arg4: memref<256x8xf32, #tpu.memory_space<vmem>>) attributes {dimension_semantics = [#tpu.dimension_semantics<arbitrary>, #tpu.dimension_semantics<parallel>], iteration_bounds = array<i64: 1, 2>, scalar_prefetch = 0 : i64, scratch_operands = 0 : i64, tpu.core_type = #tpu.core_type<tc>, window_params = [{transform_indices = @transform_0, window_bounds = array<i64: 288, 9>}, {pipeline_mode = #tpu.pipeline_mode<synchronous>, transform_indices = @transform_1, window_bounds = array<i64: 3, 9, 8>}, {transform_indices = @transform_2, window_bounds = array<i64: 256, 8>}]} {
    %c0 = arith.constant 0 : index
    %c0_0 = arith.constant 0 : index
    %0 = vector.load %arg2[%c0, %c0_0] : memref<288x9xf32, #tpu.memory_space<vmem>>, vector<288x9xf32>
    %1 = arith.truncf %0 : vector<288x9xf32> to vector<288x9xbf16>
    %cst = arith.constant 0.000000e+00 : f32
    %2 = vector.broadcast %cst : f32 to vector<256x8xf32>
    %3 = vector.extract_strided_slice %1 {offsets = [0, 0], sizes = [256, 9], strides = [1, 1]} : vector<288x9xbf16> to vector<256x9xbf16>
    %c0_1 = arith.constant 0 : index
    %c0_2 = arith.constant 0 : index
    %c0_3 = arith.constant 0 : index
    %4 = vector.load %arg3[%c0_1, %c0_2, %c0_3] : memref<3x9x8xbf16, #tpu.memory_space<vmem>>, vector<1x9x8xbf16>
    %5 = vector.shape_cast %4 : vector<1x9x8xbf16> to vector<9x8xbf16>
    %cst_4 = arith.constant dense<0.000000e+00> : vector<256x8xf32>
    %6 = tpu.matmul %3, %5, %cst_4 {dimension_numbers = #tpu.dot_dimension_numbers<[1], [0], [0], [1], [0, 0, 1, 1], [], []>} : vector<256x9xbf16>, vector<9x8xbf16>, vector<256x8xf32> -> vector<256x8xf32>
    %7 = arith.addf %2, %6 : vector<256x8xf32>
    %8 = vector.extract_strided_slice %1 {offsets = [16, 0], sizes = [256, 9], strides = [1, 1]} : vector<288x9xbf16> to vector<256x9xbf16>
    %c1 = arith.constant 1 : index
    %c0_5 = arith.constant 0 : index
    %c0_6 = arith.constant 0 : index
    %9 = vector.load %arg3[%c1, %c0_5, %c0_6] : memref<3x9x8xbf16, #tpu.memory_space<vmem>>, vector<1x9x8xbf16>
    %10 = vector.shape_cast %9 : vector<1x9x8xbf16> to vector<9x8xbf16>
    %cst_7 = arith.constant dense<0.000000e+00> : vector<256x8xf32>
    %11 = tpu.matmul %8, %10, %cst_7 {dimension_numbers = #tpu.dot_dimension_numbers<[1], [0], [0], [1], [0, 0, 1, 1], [], []>} : vector<256x9xbf16>, vector<9x8xbf16>, vector<256x8xf32> -> vector<256x8xf32>
    %12 = arith.addf %7, %11 : vector<256x8xf32>
    %13 = vector.extract_strided_slice %1 {offsets = [32, 0], sizes = [256, 9], strides = [1, 1]} : vector<288x9xbf16> to vector<256x9xbf16>
    %c2 = arith.constant 2 : index
    %c0_8 = arith.constant 0 : index
    %c0_9 = arith.constant 0 : index
    %14 = vector.load %arg3[%c2, %c0_8, %c0_9] : memref<3x9x8xbf16, #tpu.memory_space<vmem>>, vector<1x9x8xbf16>
    %15 = vector.shape_cast %14 : vector<1x9x8xbf16> to vector<9x8xbf16>
    %cst_10 = arith.constant dense<0.000000e+00> : vector<256x8xf32>
    %16 = tpu.matmul %13, %15, %cst_10 {dimension_numbers = #tpu.dot_dimension_numbers<[1], [0], [0], [1], [0, 0, 1, 1], [], []>} : vector<256x9xbf16>, vector<9x8xbf16>, vector<256x8xf32> -> vector<256x8xf32>
    %17 = arith.addf %12, %16 : vector<256x8xf32>
    %c0_i32 = arith.constant 0 : i32
    %18 = arith.cmpi eq, %arg0, %c0_i32 : i32
    %19 = arith.extui %18 : i1 to i32
    %c0_i32_11 = arith.constant 0 : i32
    %20 = arith.cmpi ne, %19, %c0_i32_11 : i32
    scf.if %20 {
      %cst_12 = arith.constant 0.000000e+00 : f32
      %21 = vector.broadcast %cst_12 : f32 to vector<256x8xf32>
      %22 = arith.cmpf oge, %17, %21 : vector<256x8xf32>
      %cst_13 = arith.constant 2.000000e-01 : f32
      %23 = vector.broadcast %cst_13 : f32 to vector<256x8xf32>
      %24 = arith.mulf %23, %17 : vector<256x8xf32>
      %25 = arith.select %22, %17, %24 : vector<256x8xi1>, vector<256x8xf32>
      %c0_14 = arith.constant 0 : index
      %c0_15 = arith.constant 0 : index
      %26 = vector.load %arg4[%c0_14, %c0_15] : memref<256x8xf32, #tpu.memory_space<vmem>>, vector<256x8xf32>
      tpu.vector_store %arg4[%c0_14, %c0_15], %25 {strides = array<i32>} : memref<256x8xf32, #tpu.memory_space<vmem>>, vector<256x8xf32>,
    } else {
    }
    return
  }
  func.func @transform_0(%arg0: i32, %arg1: i32) -> (i32, i32) {
    %c0_i32 = arith.constant 0 : i32
    %c0_i32_0 = arith.constant 0 : i32
    return %arg1, %c0_i32 : i32, i32
  }
  func.func @transform_1(%arg0: i32, %arg1: i32) -> (i32, i32, i32) {
    %c0_i32 = arith.constant 0 : i32
    %c0_i32_0 = arith.constant 0 : i32
    %c0_i32_1 = arith.constant 0 : i32
    %c0_i32_2 = arith.constant 0 : i32
    return %c0_i32, %c0_i32_0, %c0_i32_1 : i32, i32, i32
  }
  func.func @transform_2(%arg0: i32, %arg1: i32) -> (i32, i32) {
    %c0_i32 = arith.constant 0 : i32
    %c0_i32_0 = arith.constant 0 : i32
    return %arg1, %c0_i32 : i32, i32
  }
}

</mosaic_0001>

<llo_original>
// kernel: tpu_custom_call.1
$region0: #{tpu_custom_call.1}
  #allocation0 [shape = 'u32[]', space=smem, size = 0x4, offset = 0x4, fixed_abs, tag = 'smem constant byte address 0x4 - core index']
  #allocation1 [shape = 'u32[144,128]{1,0:T(1,128)}', space=vmem, size = 0x12000, scoped, tag = 'internal scratch']
  %s0 = inlined_call_operand.vmem [shape: f32[576,9], index: 0, kind: input, shape index: {}]
  %s1 = inlined_call_operand.vmem [shape: bf16[3,9,8], index: 1, kind: input, shape index: {}]
  %s2 = inlined_call_operand.vmem [shape: f32[512,8], index: 2, kind: output, shape index: {}]
  %s3 = sld [smem:[#allocation0]]
  $region45: #{tpu_custom_call.1} parent=0
    _
  %s5 = ssub.s32 1, %s3
  %s6 = scalar_select 0, %s5, %s3
  loop: start=0, step=1, limit=4
  $region2: #{tpu_custom_call.1} parent=0 // loop_pre_header
    _
  $region3: #{tpu_custom_call.1} parent=0 // loop_header
    %s8 = sphi 0, %s12
    %p9 = scmp.ge.s32.totalorder %s8, 4
    %s15 = sphi 0, %s27
    %s16 = sphi 0, %s23
    %s17 = sphi 0, %s15
    %s18 = sphi 0, %s16
    %s19 = sphi 0, %s17
    %s20 = sphi 0, %s18
    %s30 = sphi 0, %s32
    %s33 = sphi 0, %s30
    %s34 = sphi 0, %s33
    %s50 = sphi 0, %s34
    %s54 = sphi 0, %s54
    %s56 = sphi 0, %s54
    %s57 = sphi 0, %s56
    %s71 = sphi 0, %s57
    %s77 = sphi 0, %s79
    %s80 = sphi 0, %s77
    %s81 = sphi 0, %s80
    %s97 = sphi 0, %s81
  $region4: #{tpu_custom_call.1} parent=0 // loop_header_branch
    %11 = sbr.rel (%p9) target = $region8
  $region5: #{tpu_custom_call.1} parent=0 // loop_body
    %s13 = ssub.s32 %s8, 1
    %s14 = ssub.s32 %s8, 2
    %s21 = sadd.s32 1, %s16
    %p22 = scmp.ge.s32.totalorder %s21, 2
    %s23 = scalar_select %p22, 0, %s21
    %s24 = sadd.s32 1, %s15
    %s25 = scalar_select %p22, %s24, %s15
    %p26 = scmp.ge.s32.totalorder %s25, 1
    %s27 = scalar_select %p26, 0, %s25
    %s28 = ssub.s32 %s16, %s23
    %p29 = scmp.eq.s32.totalorder %s28, 0
    %s31 = sadd.s32 %s30, 1
    %s32 = scalar_select %p29, %s30, %s31
    %p35 = pneg %p29
    %p36 = scmp.eq.s32.totalorder %s8, 1
    %p37 = por %p35, %p36
    %p38 = scmp.ne.s32.totalorder %s30, %s33
    %p39 = scmp.eq.s32.totalorder %s8, 0
    %p40 = por %p38, %p39
    %p41 = scmp.ne.s32.totalorder %s30, %s33
    %p42 = scmp.eq.s32.totalorder %s13, 1
    %p43 = por %p41, %p42
    %p44 = scmp.ne.s32.totalorder %s33, %s34
    %p45 = scmp.eq.s32.totalorder %s13, 0
    %p46 = por %p44, %p45
    %p47 = scmp.ne.s32.totalorder %s33, %s34
    %p48 = scmp.eq.s32.totalorder %s14, 1
    %p49 = por %p47, %p48
    %p51 = scmp.ne.s32.totalorder %s34, %s50
    %p52 = scmp.eq.s32.totalorder %s14, 0
    %p53 = por %p51, %p52
    %s55 = sadd.s32 %s54, 1
    %p58 = scmp.eq.s32.totalorder %s8, 1
    %p59 = scmp.ne.s32.totalorder %s54, %s56
    %p60 = scmp.eq.s32.totalorder %s8, 0
    %p61 = por %p59, %p60
    %p62 = scmp.ne.s32.totalorder %s54, %s56
    %p63 = scmp.eq.s32.totalorder %s13, 1
    %p64 = por %p62, %p63
    %p65 = scmp.ne.s32.totalorder %s56, %s57
    %p66 = scmp.eq.s32.totalorder %s13, 0
    %p67 = por %p65, %p66
    %p68 = scmp.ne.s32.totalorder %s56, %s57
    %p69 = scmp.eq.s32.totalorder %s14, 1
    %p70 = por %p68, %p69
    %p72 = scmp.ne.s32.totalorder %s57, %s71
    %p73 = scmp.eq.s32.totalorder %s14, 0
    %p74 = por %p72, %p73
    %s75 = ssub.s32 %s16, %s23
    %p76 = scmp.eq.s32.totalorder %s75, 0
    %s78 = sadd.s32 %s77, 1
    %s79 = scalar_select %p76, %s77, %s78
    %p82 = pneg %p76
    %p83 = scmp.eq.s32.totalorder %s8, 1
    %p84 = por %p82, %p83
    %p85 = scmp.ne.s32.totalorder %s77, %s80
    %p86 = scmp.eq.s32.totalorder %s8, 0
    %p87 = por %p85, %p86
    %p88 = scmp.ne.s32.totalorder %s77, %s80
    %p89 = scmp.eq.s32.totalorder %s13, 1
    %p90 = por %p88, %p89
    %p91 = scmp.ne.s32.totalorder %s80, %s81
    %p92 = scmp.eq.s32.totalorder %s13, 0
    %p93 = por %p91, %p92
    %p94 = scmp.ne.s32.totalorder %s80, %s81
    %p95 = scmp.eq.s32.totalorder %s14, 1
    %p96 = por %p94, %p95
    %p98 = scmp.ne.s32.totalorder %s81, %s97
    %p99 = scmp.eq.s32.totalorder %s14, 0
    %p100 = por %p98, %p99
    %p101 = scmp.le.s32.totalorder 1, %s8
    %p102 = scmp.lt.s32.totalorder %s8, 3
    %p103 = pnand %p101, %p102
    %p104 = pneg %p103
    // Predicated region
    $region9: #{tpu_custom_call.1} parent=5 // pred_check
      _
    $region10: #{tpu_custom_call.1} parent=5 // pred_check_branch
      %106 = sbr.rel (%p103) target = $region12
    $region11: #{tpu_custom_call.1} parent=5 // pred_region
      %s107 = ssub.s32 %s8, 1
      // Predicated region
      $region13: #{tpu_custom_call.1} parent=11 // pred_check
        %p108 = pneg %p67
      $region14: #{tpu_custom_call.1} parent=11 // pred_check_branch
        %110 = sbr.rel (%p108) target = $region16
      $region15: #{tpu_custom_call.1} parent=11 // pred_region
        _
      $region16: #{tpu_custom_call.1} parent=11 // pred_fallthru
        _
    $region12: #{tpu_custom_call.1} parent=5 // pred_fallthru
      _
    %p111 = scmp.lt.s32.totalorder %s8, 2
    // Predicated region
    $region17: #{tpu_custom_call.1} parent=5 // pred_check
      %p112 = pneg %p111
    $region18: #{tpu_custom_call.1} parent=5 // pred_check_branch
      %114 = sbr.rel (%p112) target = $region20
    $region19: #{tpu_custom_call.1} parent=5 // pred_region
      // Predicated region
      $region21: #{tpu_custom_call.1} parent=19 // pred_check
        %p115 = pneg %p40
      $region22: #{tpu_custom_call.1} parent=19 // pred_check_branch
        %117 = sbr.rel (%p115) target = $region24
      $region23: #{tpu_custom_call.1} parent=19 // pred_region
        %s118 = smul.u32 36, %s16
        %p119 = scmp.lt.s32.totalorder %s118, 71
        %s120 = scalar_select %p119, %s118, 71
        %s121 = smul.addr %s120, 8
        %s122 = scalar_lea.vmem %s0, %s121
        %s123 = smul.u32 36, %s16
      $region24: #{tpu_custom_call.1} parent=19 // pred_fallthru
        _
    $region20: #{tpu_custom_call.1} parent=5 // pred_fallthru
      _
    %p124 = scmp.le.s32.totalorder 1, %s8
    %p125 = scmp.lt.s32.totalorder %s8, 3
    %p126 = pnand %p124, %p125
    %p127 = pneg %p126
    // Predicated region
    $region25: #{tpu_custom_call.1} parent=5 // pred_check
      _
    $region26: #{tpu_custom_call.1} parent=5 // pred_check_branch
      %129 = sbr.rel (%p126) target = $region28
    $region27: #{tpu_custom_call.1} parent=5 // pred_region
      %s130 = ssub.s32 %s8, 1
      %s131 = smul.u32 36, %s18
      %p132 = scmp.lt.s32.totalorder %s131, 71
      %s133 = scalar_select %p132, %s131, 71
      %s134 = smul.addr %s133, 8
      %s135 = scalar_lea.vmem %s0, %s134
      %p136 = pneg %p46
      %p137 = pneg %p43
      %p138 = pneg %p67
      %p139 = pneg %p64
      %p140 = pneg %p93
      %p141 = pneg %p90
      %s142 = smul.u32 32, %s18
      %p143 = scmp.lt.s32.totalorder %s142, 63
      %s144 = scalar_select %p143, %s142, 63
      %s145 = smul.addr %s144, 8
      %s146 = scalar_lea.vmem %s2, %s145
      %s147 = smul.u32 36, %s18
      %p148 = scmp.lt.s32.totalorder %s147, 71
      %s149 = scalar_select %p148, %s147, 71
      %s150 = smul.addr %s149, 8
      %s151 = scalar_lea.vmem %s0, %s150
      %s152 = smul.u32 36, %s18
      %s153 = smul.u32 32, %s18
      %p154 = scmp.lt.s32.totalorder %s153, 63
      %s155 = scalar_select %p154, %s153, 63
      %s156 = smul.addr %s155, 8
      %s157 = scalar_lea.vmem %s2, %s156
      %s158 = smul.u32 32, %s18
      %v160 = vld [vmem:[%s151] sm:$0xff]
      %v161 = vld [vmem:[%s151 + $0x8] sm:$0xff]
      %v162 = vld [vmem:[%s151 + $0x10] sm:$0xff]
      %v163 = vld [vmem:[%s151 + $0x18] sm:$0xff]
      %v164 = vld [vmem:[%s151 + $0x20] sm:$0xff]
      %v165 = vld [vmem:[%s151 + $0x28] sm:$0xff]
      %v166 = vld [vmem:[%s151 + $0x30] sm:$0xff]
      %v167 = vld [vmem:[%s151 + $0x38] sm:$0xff]
      %v168 = vld [vmem:[%s151 + $0x40] sm:$0xff]
      %v169 = vld [vmem:[%s151 + $0x48] sm:$0xff]
      %v170 = vld [vmem:[%s151 + $0x50] sm:$0xff]
      %v171 = vld [vmem:[%s151 + $0x58] sm:$0xff]
      %v172 = vld [vmem:[%s151 + $0x60] sm:$0xff]
      %v173 = vld [vmem:[%s151 + $0x68] sm:$0xff]
      %v174 = vld [vmem:[%s151 + $0x70] sm:$0xff]
      %v175 = vld [vmem:[%s151 + $0x78] sm:$0xff]
      %v176 = vld [vmem:[%s151 + $0x80] sm:$0xff]
      %v177 = vld [vmem:[%s151 + $0x88] sm:$0xff]
      %v178 = vld [vmem:[%s151 + $0x90] sm:$0xff]
      %v179 = vld [vmem:[%s151 + $0x98] sm:$0xff]
      %v180 = vld [vmem:[%s151 + $0xa0] sm:$0xff]
      %v181 = vld [vmem:[%s151 + $0xa8] sm:$0xff]
      %v182 = vld [vmem:[%s151 + $0xb0] sm:$0xff]
      %v183 = vld [vmem:[%s151 + $0xb8] sm:$0xff]
      %v184 = vld [vmem:[%s151 + $0xc0] sm:$0xff]
      %v185 = vld [vmem:[%s151 + $0xc8] sm:$0xff]
      %v186 = vld [vmem:[%s151 + $0xd0] sm:$0xff]
      %v187 = vld [vmem:[%s151 + $0xd8] sm:$0xff]
      %v188 = vld [vmem:[%s151 + $0xe0] sm:$0xff]
      %v189 = vld [vmem:[%s151 + $0xe8] sm:$0xff]
      %v190 = vld [vmem:[%s151 + $0xf0] sm:$0xff]
      %v191 = vld [vmem:[%s151 + $0xf8] sm:$0xff]
      %v192 = vld [vmem:[%s151 + $0x100] sm:$0xff]
      %v193 = vld [vmem:[%s151 + $0x108] sm:$0xff]
      %v194 = vld [vmem:[%s151 + $0x110] sm:$0xff]
      %v195 = vld [vmem:[%s151 + $0x118] sm:$0xff]
      %v196 = vpack.c.bf16 %v161, %v160
      %v197 = vpack.c.bf16 %v163, %v162
      %v198 = vpack.c.bf16 %v165, %v164
      %v199 = vpack.c.bf16 %v167, %v166
      %v200 = vpack.c.bf16 %v169, %v168
      %v201 = vpack.c.bf16 %v171, %v170
      %v202 = vpack.c.bf16 %v173, %v172
      %v203 = vpack.c.bf16 %v175, %v174
      %v204 = vpack.c.bf16 %v177, %v176
      %v205 = vpack.c.bf16 %v179, %v178
      %v206 = vpack.c.bf16 %v181, %v180
      %v207 = vpack.c.bf16 %v183, %v182
      %v208 = vpack.c.bf16 %v185, %v184
      %v209 = vpack.c.bf16 %v187, %v186
      %v210 = vpack.c.bf16 %v189, %v188
      %v211 = vpack.c.bf16 %v191, %v190
      %v212 = vpack.c.bf16 %v193, %v192
      %v213 = vpack.c.bf16 %v195, %v194
      %v214 = vld [vmem:[%s1] sm:$0xf]
      %v215 = vld [vmem:[%s1 + $0x4] sm:$0x1]
      %s216 = scalar_lea.vmem %s1, 8
      %v217 = vld [vmem:[%s216] sm:$0xf]
      %v218 = vld [vmem:[%s216 + $0x4] sm:$0x1]
      %v221 = vunpack.c.l.b16 %v217
      %v222 = vunpack.c.l.b16 %v218
      %v223 = vpack.c.b16 %v222, %v221
      %vm224 = vcmask 72704
      %v226 = vsel %vm224, %v197, 0
      %v229 = vsel %vm224, %v198, 0
      %v232 = vsel %vm224, %v199, 0
      %v235 = vsel %vm224, %v200, 0
      %v238 = vsel %vm224, %v201, 0
      %v241 = vsel %vm224, %v202, 0
      %v244 = vsel %vm224, %v203, 0
      %v247 = vsel %vm224, %v204, 0
      %v250 = vsel %vm224, %v205, 0
      %v253 = vsel %vm224, %v206, 0
      %v256 = vsel %vm224, %v207, 0
      %v259 = vsel %vm224, %v208, 0
      %v262 = vsel %vm224, %v209, 0
      %v265 = vsel %vm224, %v210, 0
      %v268 = vsel %vm224, %v211, 0
      %v271 = vsel %vm224, %v212, 0
      %vm273 = vcmask 1043456
      %vm274 = vcmask 1044480
      %v275 = vsel %vm273, 4294967295, 65535
      %v276 = vsel %vm274, %v275, 0
      %v278 = vand.u32 %v223, %v276
      %280 = vmatprep.subr.bf16.mxu0 0
      %281 = vmatpush1.bf16.msra.mxu0 0
      %282 = vmatprep.subr.bf16.mxu0 0
      %283 = vmatpush1.bf16.msra.mxu0 0
      %284 = vmatprep.subr.bf16.mxu0 0
      %285 = vmatpush1.bf16.msra.mxu0 0
      %286 = vmatprep.subr.bf16.mxu0 0
      %287 = vmatpush1.bf16.msra.mxu0 0
      %288 = vmatprep.subr.bf16.mxu0 0
      %289 = vmatpush1.bf16.msra.mxu0 0
      %290 = vmatprep.subr.bf16.mxu0 0
      %291 = vmatpush1.bf16.msra.mxu0 0
      %292 = vmatprep.subr.bf16.mxu0 0
      %293 = vmatpush1.bf16.msra.mxu0 0
      %294 = vmatprep.subr.bf16.mxu0 0
      %295 = vmatpush1.bf16.msra.mxu0 %v278
      %296 = vmatprep.subr.bf16.mxu0 0
      %297 = vmatpush2.bf16.msra.mxu0 0
      %298 = vmatprep.subr.bf16.mxu0 0
      %299 = vmatpush2.bf16.msra.mxu0 0
      %300 = vmatprep.subr.bf16.mxu0 0
      %301 = vmatpush2.bf16.msra.mxu0 0
      %302 = vmatprep.subr.bf16.mxu0 0
      %303 = vmatpush2.bf16.msra.mxu0 0
      %304 = vmatprep.subr.bf16.mxu0 0
      %305 = vmatpush2.bf16.msra.mxu0 0
      %306 = vmatprep.subr.bf16.mxu0 0
      %307 = vmatpush2.bf16.msra.mxu0 0
      %308 = vmatprep.subr.bf16.mxu0 0
      %309 = vmatpush2.bf16.msra.mxu0 0
      %310 = vmatprep.subr.bf16.mxu0 0
      %311 = vmatpush2.bf16.msra.mxu0 0
      %312 = vmatprep.mubr.bf16.mxu0 0
      %313 = vmatmul.mubr.bf16.gmra.mxu0 %v226
      %v314 = vpop.f32.mrf.mxu0
      %v315 = vadd.f32 0.0, %v314
      %v316 = vpop.f32.mrf.mxu0
      %v317 = vpop.f32.mrf.mxu0
      %v318 = vadd.f32 0.0, %v317
      %v319 = vpop.f32.mrf.mxu0
      %320 = vmatprep.mubr.bf16.mxu0 0
      %321 = vmatmul.mubr.bf16.gmra.mxu0 %v229
      %v322 = vpop.f32.mrf.mxu0
      %v323 = vadd.f32 0.0, %v322
      %v324 = vpop.f32.mrf.mxu0
      %v325 = vpop.f32.mrf.mxu0
      %v326 = vadd.f32 0.0, %v325
      %v327 = vpop.f32.mrf.mxu0
      %328 = vmatprep.mubr.bf16.mxu0 0
      %329 = vmatmul.mubr.bf16.gmra.mxu0 %v232
      %v330 = vpop.f32.mrf.mxu0
      %v331 = vadd.f32 0.0, %v330
      %v332 = vpop.f32.mrf.mxu0
      %v333 = vpop.f32.mrf.mxu0
      %v334 = vadd.f32 0.0, %v333
      %v335 = vpop.f32.mrf.mxu0
      %336 = vmatprep.mubr.bf16.mxu0 0
      %337 = vmatmul.mubr.bf16.gmra.mxu0 %v235
      %v338 = vpop.f32.mrf.mxu0
      %v339 = vadd.f32 0.0, %v338
      %v340 = vpop.f32.mrf.mxu0
      %v341 = vpop.f32.mrf.mxu0
      %v342 = vadd.f32 0.0, %v341
      %v343 = vpop.f32.mrf.mxu0
      %344 = vmatprep.mubr.bf16.mxu0 0
      %345 = vmatmul.mubr.bf16.gmra.mxu0 %v238
      %v346 = vpop.f32.mrf.mxu0
      %v347 = vadd.f32 0.0, %v346
      %v348 = vpop.f32.mrf.mxu0
      %v349 = vpop.f32.mrf.mxu0
      %v350 = vadd.f32 0.0, %v349
      %v351 = vpop.f32.mrf.mxu0
      %352 = vmatprep.mubr.bf16.mxu0 0
      %353 = vmatmul.mubr.bf16.gmra.mxu0 %v241
      %v354 = vpop.f32.mrf.mxu0
      %v355 = vadd.f32 0.0, %v354
      %v356 = vpop.f32.mrf.mxu0
      %v357 = vpop.f32.mrf.mxu0
      %v358 = vadd.f32 0.0, %v357
      %v359 = vpop.f32.mrf.mxu0
      %360 = vmatprep.mubr.bf16.mxu0 0
      %361 = vmatmul.mubr.bf16.gmra.mxu0 %v244
      %v362 = vpop.f32.mrf.mxu0
      %v363 = vadd.f32 0.0, %v362
      %v364 = vpop.f32.mrf.mxu0
      %v365 = vpop.f32.mrf.mxu0
      %v366 = vadd.f32 0.0, %v365
      %v367 = vpop.f32.mrf.mxu0
      %368 = vmatprep.mubr.bf16.mxu0 0
      %369 = vmatmul.mubr.bf16.gmra.mxu0 %v247
      %v370 = vpop.f32.mrf.mxu0
      %v371 = vadd.f32 0.0, %v370
      %v372 = vpop.f32.mrf.mxu0
      %v373 = vpop.f32.mrf.mxu0
      %v374 = vadd.f32 0.0, %v373
      %v375 = vpop.f32.mrf.mxu0
      %376 = vmatprep.mubr.bf16.mxu0 0
      %377 = vmatmul.mubr.bf16.gmra.mxu0 %v250
      %v378 = vpop.f32.mrf.mxu0
      %v379 = vadd.f32 0.0, %v378
      %v380 = vpop.f32.mrf.mxu0
      %v381 = vpop.f32.mrf.mxu0
      %v382 = vadd.f32 0.0, %v381
      %v383 = vpop.f32.mrf.mxu0
      %384 = vmatprep.mubr.bf16.mxu0 0
      %385 = vmatmul.mubr.bf16.gmra.mxu0 %v253
      %v386 = vpop.f32.mrf.mxu0
      %v387 = vadd.f32 0.0, %v386
      %v388 = vpop.f32.mrf.mxu0
      %v389 = vpop.f32.mrf.mxu0
      %v390 = vadd.f32 0.0, %v389
      %v391 = vpop.f32.mrf.mxu0
      %392 = vmatprep.mubr.bf16.mxu0 0
      %393 = vmatmul.mubr.bf16.gmra.mxu0 %v256
      %v394 = vpop.f32.mrf.mxu0
      %v395 = vadd.f32 0.0, %v394
      %v396 = vpop.f32.mrf.mxu0
      %v397 = vpop.f32.mrf.mxu0
      %v398 = vadd.f32 0.0, %v397
      %v399 = vpop.f32.mrf.mxu0
      %400 = vmatprep.mubr.bf16.mxu0 0
      %401 = vmatmul.mubr.bf16.gmra.mxu0 %v259
      %v402 = vpop.f32.mrf.mxu0
      %v403 = vadd.f32 0.0, %v402
      %v404 = vpop.f32.mrf.mxu0
      %v405 = vpop.f32.mrf.mxu0
      %v406 = vadd.f32 0.0, %v405
      %v407 = vpop.f32.mrf.mxu0
      %408 = vmatprep.mubr.bf16.mxu0 0
      %409 = vmatmul.mubr.bf16.gmra.mxu0 %v262
      %v410 = vpop.f32.mrf.mxu0
      %v411 = vadd.f32 0.0, %v410
      %v412 = vpop.f32.mrf.mxu0
      %v413 = vpop.f32.mrf.mxu0
      %v414 = vadd.f32 0.0, %v413
      %v415 = vpop.f32.mrf.mxu0
      %416 = vmatprep.mubr.bf16.mxu0 0
      %417 = vmatmul.mubr.bf16.gmra.mxu0 %v265
      %v418 = vpop.f32.mrf.mxu0
      %v419 = vadd.f32 0.0, %v418
      %v420 = vpop.f32.mrf.mxu0
      %v421 = vpop.f32.mrf.mxu0
      %v422 = vadd.f32 0.0, %v421
      %v423 = vpop.f32.mrf.mxu0
      %424 = vmatprep.mubr.bf16.mxu0 0
      %425 = vmatmul.mubr.bf16.gmra.mxu0 %v268
      %v426 = vpop.f32.mrf.mxu0
      %v427 = vadd.f32 0.0, %v426
      %v428 = vpop.f32.mrf.mxu0
      %v429 = vpop.f32.mrf.mxu0
      %v430 = vadd.f32 0.0, %v429
      %v431 = vpop.f32.mrf.mxu0
      %432 = vmatprep.mubr.bf16.mxu0 0
      %433 = vmatmul.mubr.bf16.gmra.mxu0 %v271
      %v434 = vpop.f32.mrf.mxu0
      %v435 = vadd.f32 0.0, %v434
      %v436 = vpop.f32.mrf.mxu0
      %v437 = vpop.f32.mrf.mxu0
      %v438 = vadd.f32 0.0, %v437
      %v439 = vpop.f32.mrf.mxu0
      %440 = vdwg.mxu0
      %v443 = vunpack.c.l.b16 %v214
      %v444 = vunpack.c.l.b16 %v215
      %v445 = vpack.c.b16 %v444, %v443
      %v447 = vsel %vm224, %v196, 0
      %v450 = vand.u32 %v445, %v276
      %452 = vmatprep.subr.bf16.mxu0 0
      %453 = vmatpush1.bf16.msra.mxu0 0
      %454 = vmatprep.subr.bf16.mxu0 0
      %455 = vmatpush1.bf16.msra.mxu0 0
      %456 = vmatprep.subr.bf16.mxu0 0
      %457 = vmatpush1.bf16.msra.mxu0 0
      %458 = vmatprep.subr.bf16.mxu0 0
      %459 = vmatpush1.bf16.msra.mxu0 0
      %460 = vmatprep.subr.bf16.mxu0 0
      %461 = vmatpush1.bf16.msra.mxu0 0
      %462 = vmatprep.subr.bf16.mxu0 0
      %463 = vmatpush1.bf16.msra.mxu0 0
      %464 = vmatprep.subr.bf16.mxu0 0
      %465 = vmatpush1.bf16.msra.mxu0 0
      %466 = vmatprep.subr.bf16.mxu0 0
      %467 = vmatpush1.bf16.msra.mxu0 %v450
      %468 = vmatprep.subr.bf16.mxu0 0
      %469 = vmatpush2.bf16.msra.mxu0 0
      %470 = vmatprep.subr.bf16.mxu0 0
      %471 = vmatpush2.bf16.msra.mxu0 0
      %472 = vmatprep.subr.bf16.mxu0 0
      %473 = vmatpush2.bf16.msra.mxu0 0
      %474 = vmatprep.subr.bf16.mxu0 0
      %475 = vmatpush2.bf16.msra.mxu0 0
      %476 = vmatprep.subr.bf16.mxu0 0
      %477 = vmatpush2.bf16.msra.mxu0 0
      %478 = vmatprep.subr.bf16.mxu0 0
      %479 = vmatpush2.bf16.msra.mxu0 0
      %480 = vmatprep.subr.bf16.mxu0 0
      %481 = vmatpush2.bf16.msra.mxu0 0
      %482 = vmatprep.subr.bf16.mxu0 0
      %483 = vmatpush2.bf16.msra.mxu0 0
      %484 = vmatprep.mubr.bf16.mxu0 0
      %485 = vmatmul.mubr.bf16.gmra.mxu0 %v447
      %v486 = vpop.f32.mrf.mxu0
      %v487 = vadd.f32 %v315, %v486
      %v488 = vpop.f32.mrf.mxu0
      %v489 = vpop.f32.mrf.mxu0
      %v490 = vadd.f32 %v318, %v489
      %v491 = vpop.f32.mrf.mxu0
      %492 = vmatprep.mubr.bf16.mxu0 0
      %493 = vmatmul.mubr.bf16.gmra.mxu0 %v226
      %v494 = vpop.f32.mrf.mxu0
      %v495 = vadd.f32 %v323, %v494
      %v496 = vpop.f32.mrf.mxu0
      %v497 = vpop.f32.mrf.mxu0
      %v498 = vadd.f32 %v326, %v497
      %v499 = vpop.f32.mrf.mxu0
      %500 = vmatprep.mubr.bf16.mxu0 0
      %501 = vmatmul.mubr.bf16.gmra.mxu0 %v229
      %v502 = vpop.f32.mrf.mxu0
      %v503 = vadd.f32 %v331, %v502
      %v504 = vpop.f32.mrf.mxu0
      %v505 = vpop.f32.mrf.mxu0
      %v506 = vadd.f32 %v334, %v505
      %v507 = vpop.f32.mrf.mxu0
      %508 = vmatprep.mubr.bf16.mxu0 0
      %509 = vmatmul.mubr.bf16.gmra.mxu0 %v232
      %v510 = vpop.f32.mrf.mxu0
      %v511 = vadd.f32 %v339, %v510
      %v512 = vpop.f32.mrf.mxu0
      %v513 = vpop.f32.mrf.mxu0
      %v514 = vadd.f32 %v342, %v513
      %v515 = vpop.f32.mrf.mxu0
      %516 = vmatprep.mubr.bf16.mxu0 0
      %517 = vmatmul.mubr.bf16.gmra.mxu0 %v235
      %v518 = vpop.f32.mrf.mxu0
      %v519 = vadd.f32 %v347, %v518
      %v520 = vpop.f32.mrf.mxu0
      %v521 = vpop.f32.mrf.mxu0
      %v522 = vadd.f32 %v350, %v521
      %v523 = vpop.f32.mrf.mxu0
      %524 = vmatprep.mubr.bf16.mxu0 0
      %525 = vmatmul.mubr.bf16.gmra.mxu0 %v238
      %v526 = vpop.f32.mrf.mxu0
      %v527 = vadd.f32 %v355, %v526
      %v528 = vpop.f32.mrf.mxu0
      %v529 = vpop.f32.mrf.mxu0
      %v530 = vadd.f32 %v358, %v529
      %v531 = vpop.f32.mrf.mxu0
      %532 = vmatprep.mubr.bf16.mxu0 0
      %533 = vmatmul.mubr.bf16.gmra.mxu0 %v241
      %v534 = vpop.f32.mrf.mxu0
      %v535 = vadd.f32 %v363, %v534
      %v536 = vpop.f32.mrf.mxu0
      %v537 = vpop.f32.mrf.mxu0
      %v538 = vadd.f32 %v366, %v537
      %v539 = vpop.f32.mrf.mxu0
      %540 = vmatprep.mubr.bf16.mxu0 0
      %541 = vmatmul.mubr.bf16.gmra.mxu0 %v244
      %v542 = vpop.f32.mrf.mxu0
      %v543 = vadd.f32 %v371, %v542
      %v544 = vpop.f32.mrf.mxu0
      %v545 = vpop.f32.mrf.mxu0
      %v546 = vadd.f32 %v374, %v545
      %v547 = vpop.f32.mrf.mxu0
      %548 = vmatprep.mubr.bf16.mxu0 0
      %549 = vmatmul.mubr.bf16.gmra.mxu0 %v247
      %v550 = vpop.f32.mrf.mxu0
      %v551 = vadd.f32 %v379, %v550
      %v552 = vpop.f32.mrf.mxu0
      %v553 = vpop.f32.mrf.mxu0
      %v554 = vadd.f32 %v382, %v553
      %v555 = vpop.f32.mrf.mxu0
      %556 = vmatprep.mubr.bf16.mxu0 0
      %557 = vmatmul.mubr.bf16.gmra.mxu0 %v250
      %v558 = vpop.f32.mrf.mxu0
      %v559 = vadd.f32 %v387, %v558
      %v560 = vpop.f32.mrf.mxu0
      %v561 = vpop.f32.mrf.mxu0
      %v562 = vadd.f32 %v390, %v561
      %v563 = vpop.f32.mrf.mxu0
      %564 = vmatprep.mubr.bf16.mxu0 0
      %565 = vmatmul.mubr.bf16.gmra.mxu0 %v253
      %v566 = vpop.f32.mrf.mxu0
      %v567 = vadd.f32 %v395, %v566
      %v568 = vpop.f32.mrf.mxu0
      %v569 = vpop.f32.mrf.mxu0
      %v570 = vadd.f32 %v398, %v569
      %v571 = vpop.f32.mrf.mxu0
      %572 = vmatprep.mubr.bf16.mxu0 0
      %573 = vmatmul.mubr.bf16.gmra.mxu0 %v256
      %v574 = vpop.f32.mrf.mxu0
      %v575 = vadd.f32 %v403, %v574
      %v576 = vpop.f32.mrf.mxu0
      %v577 = vpop.f32.mrf.mxu0
      %v578 = vadd.f32 %v406, %v577
      %v579 = vpop.f32.mrf.mxu0
      %580 = vmatprep.mubr.bf16.mxu0 0
      %581 = vmatmul.mubr.bf16.gmra.mxu0 %v259
      %v582 = vpop.f32.mrf.mxu0
      %v583 = vadd.f32 %v411, %v582
      %v584 = vpop.f32.mrf.mxu0
      %v585 = vpop.f32.mrf.mxu0
      %v586 = vadd.f32 %v414, %v585
      %v587 = vpop.f32.mrf.mxu0
      %588 = vmatprep.mubr.bf16.mxu0 0
      %589 = vmatmul.mubr.bf16.gmra.mxu0 %v262
      %v590 = vpop.f32.mrf.mxu0
      %v591 = vadd.f32 %v419, %v590
      %v592 = vpop.f32.mrf.mxu0
      %v593 = vpop.f32.mrf.mxu0
      %v594 = vadd.f32 %v422, %v593
      %v595 = vpop.f32.mrf.mxu0
      %596 = vmatprep.mubr.bf16.mxu0 0
      %597 = vmatmul.mubr.bf16.gmra.mxu0 %v265
      %v598 = vpop.f32.mrf.mxu0
      %v599 = vadd.f32 %v427, %v598
      %v600 = vpop.f32.mrf.mxu0
      %v601 = vpop.f32.mrf.mxu0
      %v602 = vadd.f32 %v430, %v601
      %v603 = vpop.f32.mrf.mxu0
      %604 = vmatprep.mubr.bf16.mxu0 0
      %605 = vmatmul.mubr.bf16.gmra.mxu0 %v268
      %v606 = vpop.f32.mrf.mxu0
      %v607 = vadd.f32 %v435, %v606
      %v608 = vpop.f32.mrf.mxu0
      %v609 = vpop.f32.mrf.mxu0
      %v610 = vadd.f32 %v438, %v609
      %v611 = vpop.f32.mrf.mxu0
      %612 = vdwg.mxu0
      %s613 = scalar_lea.vmem %s1, 16
      %v614 = vld [vmem:[%s613] sm:$0xf]
      %v615 = vld [vmem:[%s613 + $0x4] sm:$0x1]
      %v618 = vunpack.c.l.b16 %v614
      %v619 = vunpack.c.l.b16 %v615
      %v620 = vpack.c.b16 %v619, %v618
      %v622 = vsel %vm224, %v213, 0
      %v625 = vand.u32 %v620, %v276
      %627 = vmatprep.subr.bf16.mxu0 0
      %628 = vmatpush1.bf16.msra.mxu0 0
      %629 = vmatprep.subr.bf16.mxu0 0
      %630 = vmatpush1.bf16.msra.mxu0 0
      %631 = vmatprep.subr.bf16.mxu0 0
      %632 = vmatpush1.bf16.msra.mxu0 0
      %633 = vmatprep.subr.bf16.mxu0 0
      %634 = vmatpush1.bf16.msra.mxu0 0
      %635 = vmatprep.subr.bf16.mxu0 0
      %636 = vmatpush1.bf16.msra.mxu0 0
      %637 = vmatprep.subr.bf16.mxu0 0
      %638 = vmatpush1.bf16.msra.mxu0 0
      %639 = vmatprep.subr.bf16.mxu0 0
      %640 = vmatpush1.bf16.msra.mxu0 0
      %641 = vmatprep.subr.bf16.mxu0 0
      %642 = vmatpush1.bf16.msra.mxu0 %v625
      %643 = vmatprep.subr.bf16.mxu0 0
      %644 = vmatpush2.bf16.msra.mxu0 0
      %645 = vmatprep.subr.bf16.mxu0 0
      %646 = vmatpush2.bf16.msra.mxu0 0
      %647 = vmatprep.subr.bf16.mxu0 0
      %648 = vmatpush2.bf16.msra.mxu0 0
      %649 = vmatprep.subr.bf16.mxu0 0
      %650 = vmatpush2.bf16.msra.mxu0 0
      %651 = vmatprep.subr.bf16.mxu0 0
      %652 = vmatpush2.bf16.msra.mxu0 0
      %653 = vmatprep.subr.bf16.mxu0 0
      %654 = vmatpush2.bf16.msra.mxu0 0
      %655 = vmatprep.subr.bf16.mxu0 0
      %656 = vmatpush2.bf16.msra.mxu0 0
      %657 = vmatprep.subr.bf16.mxu0 0
      %658 = vmatpush2.bf16.msra.mxu0 0
      %659 = vmatprep.mubr.bf16.mxu0 0
      %660 = vmatmul.mubr.bf16.gmra.mxu0 %v229
      %v661 = vpop.f32.mrf.mxu0
      %v662 = vadd.f32 0.0, %v661
      %v663 = vpop.f32.mrf.mxu0
      %v664 = vpop.f32.mrf.mxu0
      %v665 = vadd.f32 0.0, %v664
      %v666 = vpop.f32.mrf.mxu0
      %667 = vmatprep.mubr.bf16.mxu0 0
      %668 = vmatmul.mubr.bf16.gmra.mxu0 %v232
      %v669 = vpop.f32.mrf.mxu0
      %v670 = vadd.f32 0.0, %v669
      %v671 = vpop.f32.mrf.mxu0
      %v672 = vpop.f32.mrf.mxu0
      %v673 = vadd.f32 0.0, %v672
      %v674 = vpop.f32.mrf.mxu0
      %675 = vmatprep.mubr.bf16.mxu0 0
      %676 = vmatmul.mubr.bf16.gmra.mxu0 %v235
      %v677 = vpop.f32.mrf.mxu0
      %v678 = vadd.f32 0.0, %v677
      %v679 = vpop.f32.mrf.mxu0
      %v680 = vpop.f32.mrf.mxu0
      %v681 = vadd.f32 0.0, %v680
      %v682 = vpop.f32.mrf.mxu0
      %683 = vmatprep.mubr.bf16.mxu0 0
      %684 = vmatmul.mubr.bf16.gmra.mxu0 %v238
      %v685 = vpop.f32.mrf.mxu0
      %v686 = vadd.f32 0.0, %v685
      %v687 = vpop.f32.mrf.mxu0
      %v688 = vpop.f32.mrf.mxu0
      %v689 = vadd.f32 0.0, %v688
      %v690 = vpop.f32.mrf.mxu0
      %691 = vmatprep.mubr.bf16.mxu0 0
      %692 = vmatmul.mubr.bf16.gmra.mxu0 %v241
      %v693 = vpop.f32.mrf.mxu0
      %v694 = vadd.f32 0.0, %v693
      %v695 = vpop.f32.mrf.mxu0
      %v696 = vpop.f32.mrf.mxu0
      %v697 = vadd.f32 0.0, %v696
      %v698 = vpop.f32.mrf.mxu0
      %699 = vmatprep.mubr.bf16.mxu0 0
      %700 = vmatmul.mubr.bf16.gmra.mxu0 %v244
      %v701 = vpop.f32.mrf.mxu0
      %v702 = vadd.f32 0.0, %v701
      %v703 = vpop.f32.mrf.mxu0
      %v704 = vpop.f32.mrf.mxu0
      %v705 = vadd.f32 0.0, %v704
      %v706 = vpop.f32.mrf.mxu0
      %707 = vmatprep.mubr.bf16.mxu0 0
      %708 = vmatmul.mubr.bf16.gmra.mxu0 %v247
      %v709 = vpop.f32.mrf.mxu0
      %v710 = vadd.f32 0.0, %v709
      %v711 = vpop.f32.mrf.mxu0
      %v712 = vpop.f32.mrf.mxu0
      %v713 = vadd.f32 0.0, %v712
      %v714 = vpop.f32.mrf.mxu0
      %715 = vmatprep.mubr.bf16.mxu0 0
      %716 = vmatmul.mubr.bf16.gmra.mxu0 %v250
      %v717 = vpop.f32.mrf.mxu0
      %v718 = vadd.f32 0.0, %v717
      %v719 = vpop.f32.mrf.mxu0
      %v720 = vpop.f32.mrf.mxu0
      %v721 = vadd.f32 0.0, %v720
      %v722 = vpop.f32.mrf.mxu0
      %723 = vmatprep.mubr.bf16.mxu0 0
      %724 = vmatmul.mubr.bf16.gmra.mxu0 %v253
      %v725 = vpop.f32.mrf.mxu0
      %v726 = vadd.f32 0.0, %v725
      %v727 = vpop.f32.mrf.mxu0
      %v728 = vpop.f32.mrf.mxu0
      %v729 = vadd.f32 0.0, %v728
      %v730 = vpop.f32.mrf.mxu0
      %731 = vmatprep.mubr.bf16.mxu0 0
      %732 = vmatmul.mubr.bf16.gmra.mxu0 %v256
      %v733 = vpop.f32.mrf.mxu0
      %v734 = vadd.f32 0.0, %v733
      %v735 = vpop.f32.mrf.mxu0
      %v736 = vpop.f32.mrf.mxu0
      %v737 = vadd.f32 0.0, %v736
      %v738 = vpop.f32.mrf.mxu0
      %739 = vmatprep.mubr.bf16.mxu0 0
      %740 = vmatmul.mubr.bf16.gmra.mxu0 %v259
      %v741 = vpop.f32.mrf.mxu0
      %v742 = vadd.f32 0.0, %v741
      %v743 = vpop.f32.mrf.mxu0
      %v744 = vpop.f32.mrf.mxu0
      %v745 = vadd.f32 0.0, %v744
      %v746 = vpop.f32.mrf.mxu0
      %747 = vmatprep.mubr.bf16.mxu0 0
      %748 = vmatmul.mubr.bf16.gmra.mxu0 %v262
      %v749 = vpop.f32.mrf.mxu0
      %v750 = vadd.f32 0.0, %v749
      %v751 = vpop.f32.mrf.mxu0
      %v752 = vpop.f32.mrf.mxu0
      %v753 = vadd.f32 0.0, %v752
      %v754 = vpop.f32.mrf.mxu0
      %755 = vmatprep.mubr.bf16.mxu0 0
      %756 = vmatmul.mubr.bf16.gmra.mxu0 %v265
      %v757 = vpop.f32.mrf.mxu0
      %v758 = vadd.f32 0.0, %v757
      %v759 = vpop.f32.mrf.mxu0
      %v760 = vpop.f32.mrf.mxu0
      %v761 = vadd.f32 0.0, %v760
      %v762 = vpop.f32.mrf.mxu0
      %763 = vmatprep.mubr.bf16.mxu0 0
      %764 = vmatmul.mubr.bf16.gmra.mxu0 %v268
      %v765 = vpop.f32.mrf.mxu0
      %v766 = vadd.f32 0.0, %v765
      %v767 = vpop.f32.mrf.mxu0
      %v768 = vpop.f32.mrf.mxu0
      %v769 = vadd.f32 0.0, %v768
      %v770 = vpop.f32.mrf.mxu0
      %771 = vmatprep.mubr.bf16.mxu0 0
      %772 = vmatmul.mubr.bf16.gmra.mxu0 %v271
      %v773 = vpop.f32.mrf.mxu0
      %v774 = vadd.f32 0.0, %v773
      %v775 = vpop.f32.mrf.mxu0
      %v776 = vpop.f32.mrf.mxu0
      %v777 = vadd.f32 0.0, %v776
      %v778 = vpop.f32.mrf.mxu0
      %779 = vmatprep.mubr.bf16.mxu0 0
      %780 = vmatmul.mubr.bf16.gmra.mxu0 %v622
      %v781 = vpop.f32.mrf.mxu0
      %v782 = vadd.f32 0.0, %v781
      %v783 = vpop.f32.mrf.mxu0
      %v784 = vpop.f32.mrf.mxu0
      %v785 = vadd.f32 0.0, %v784
      %v786 = vpop.f32.mrf.mxu0
      %787 = vdwg.mxu0
      %v788 = vadd.f32 %v487, %v662
      %v789 = vadd.f32 %v490, %v665
      %v790 = vadd.f32 %v495, %v670
      %v791 = vadd.f32 %v498, %v673
      %v792 = vadd.f32 %v503, %v678
      %v793 = vadd.f32 %v506, %v681
      %v794 = vadd.f32 %v511, %v686
      %v795 = vadd.f32 %v514, %v689
      %v796 = vadd.f32 %v519, %v694
      %v797 = vadd.f32 %v522, %v697
      %v798 = vadd.f32 %v527, %v702
      %v799 = vadd.f32 %v530, %v705
      %v800 = vadd.f32 %v535, %v710
      %v801 = vadd.f32 %v538, %v713
      %v802 = vadd.f32 %v543, %v718
      %v803 = vadd.f32 %v546, %v721
      %v804 = vadd.f32 %v551, %v726
      %v805 = vadd.f32 %v554, %v729
      %v806 = vadd.f32 %v559, %v734
      %v807 = vadd.f32 %v562, %v737
      %v808 = vadd.f32 %v567, %v742
      %v809 = vadd.f32 %v570, %v745
      %v810 = vadd.f32 %v575, %v750
      %v811 = vadd.f32 %v578, %v753
      %v812 = vadd.f32 %v583, %v758
      %v813 = vadd.f32 %v586, %v761
      %v814 = vadd.f32 %v591, %v766
      %v815 = vadd.f32 %v594, %v769
      %v816 = vadd.f32 %v599, %v774
      %v817 = vadd.f32 %v602, %v777
      %v818 = vadd.f32 %v607, %v782
      %v819 = vadd.f32 %v610, %v785
      %p820 = scmp.eq.s32.totalorder %s17, 0
      // Predicated region
      $region29: #{tpu_custom_call.1} parent=27 // pred_check
        %p821 = pneg %p820
      $region30: #{tpu_custom_call.1} parent=27 // pred_check_branch
        %823 = sbr.rel (%p821) target = $region32
      $region31: #{tpu_custom_call.1} parent=27 // pred_region
        %vm824 = vcmp.ge.f32.partialorder %v788, 0.0
        %vm825 = vcmp.ge.f32.partialorder %v789, 0.0
        %vm826 = vcmp.ge.f32.partialorder %v790, 0.0
        %vm827 = vcmp.ge.f32.partialorder %v791, 0.0
        %vm828 = vcmp.ge.f32.partialorder %v792, 0.0
        %vm829 = vcmp.ge.f32.partialorder %v793, 0.0
        %vm830 = vcmp.ge.f32.partialorder %v794, 0.0
        %vm831 = vcmp.ge.f32.partialorder %v795, 0.0
        %vm832 = vcmp.ge.f32.partialorder %v796, 0.0
        %vm833 = vcmp.ge.f32.partialorder %v797, 0.0
        %vm834 = vcmp.ge.f32.partialorder %v798, 0.0
        %vm835 = vcmp.ge.f32.partialorder %v799, 0.0
        %vm836 = vcmp.ge.f32.partialorder %v800, 0.0
        %vm837 = vcmp.ge.f32.partialorder %v801, 0.0
        %vm838 = vcmp.ge.f32.partialorder %v802, 0.0
        %vm839 = vcmp.ge.f32.partialorder %v803, 0.0
        %vm840 = vcmp.ge.f32.partialorder %v804, 0.0
        %vm841 = vcmp.ge.f32.partialorder %v805, 0.0
        %vm842 = vcmp.ge.f32.partialorder %v806, 0.0
        %vm843 = vcmp.ge.f32.partialorder %v807, 0.0
        %vm844 = vcmp.ge.f32.partialorder %v808, 0.0
        %vm845 = vcmp.ge.f32.partialorder %v809, 0.0
        %vm846 = vcmp.ge.f32.partialorder %v810, 0.0
        %vm847 = vcmp.ge.f32.partialorder %v811, 0.0
        %vm848 = vcmp.ge.f32.partialorder %v812, 0.0
        %vm849 = vcmp.ge.f32.partialorder %v813, 0.0
        %vm850 = vcmp.ge.f32.partialorder %v814, 0.0
        %vm851 = vcmp.ge.f32.partialorder %v815, 0.0
        %vm852 = vcmp.ge.f32.partialorder %v816, 0.0
        %vm853 = vcmp.ge.f32.partialorder %v817, 0.0
        %vm854 = vcmp.ge.f32.partialorder %v818, 0.0
        %vm855 = vcmp.ge.f32.partialorder %v819, 0.0
        %v856 = vmul.f32 %v788, 0.2
        %v857 = vmul.f32 %v789, 0.2
        %v858 = vmul.f32 %v790, 0.2
        %v859 = vmul.f32 %v791, 0.2
        %v860 = vmul.f32 %v792, 0.2
        %v861 = vmul.f32 %v793, 0.2
        %v862 = vmul.f32 %v794, 0.2
        %v863 = vmul.f32 %v795, 0.2
        %v864 = vmul.f32 %v796, 0.2
        %v865 = vmul.f32 %v797, 0.2
        %v866 = vmul.f32 %v798, 0.2
        %v867 = vmul.f32 %v799, 0.2
        %v868 = vmul.f32 %v800, 0.2
        %v869 = vmul.f32 %v801, 0.2
        %v870 = vmul.f32 %v802, 0.2
        %v871 = vmul.f32 %v803, 0.2
        %v872 = vmul.f32 %v804, 0.2
        %v873 = vmul.f32 %v805, 0.2
        %v874 = vmul.f32 %v806, 0.2
        %v875 = vmul.f32 %v807, 0.2
        %v876 = vmul.f32 %v808, 0.2
        %v877 = vmul.f32 %v809, 0.2
        %v878 = vmul.f32 %v810, 0.2
        %v879 = vmul.f32 %v811, 0.2
        %v880 = vmul.f32 %v812, 0.2
        %v881 = vmul.f32 %v813, 0.2
        %v882 = vmul.f32 %v814, 0.2
        %v883 = vmul.f32 %v815, 0.2
        %v884 = vmul.f32 %v816, 0.2
        %v885 = vmul.f32 %v817, 0.2
        %v886 = vmul.f32 %v818, 0.2
        %v887 = vmul.f32 %v819, 0.2
        %v888 = vsel %vm824, %v788, %v856
        %v889 = vsel %vm825, %v789, %v857
        %v890 = vsel %vm826, %v790, %v858
        %v891 = vsel %vm827, %v791, %v859
        %v892 = vsel %vm828, %v792, %v860
        %v893 = vsel %vm829, %v793, %v861
        %v894 = vsel %vm830, %v794, %v862
        %v895 = vsel %vm831, %v795, %v863
        %v896 = vsel %vm832, %v796, %v864
        %v897 = vsel %vm833, %v797, %v865
        %v898 = vsel %vm834, %v798, %v866
        %v899 = vsel %vm835, %v799, %v867
        %v900 = vsel %vm836, %v800, %v868
        %v901 = vsel %vm837, %v801, %v869
        %v902 = vsel %vm838, %v802, %v870
        %v903 = vsel %vm839, %v803, %v871
        %v904 = vsel %vm840, %v804, %v872
        %v905 = vsel %vm841, %v805, %v873
        %v906 = vsel %vm842, %v806, %v874
        %v907 = vsel %vm843, %v807, %v875
        %v908 = vsel %vm844, %v808, %v876
        %v909 = vsel %vm845, %v809, %v877
        %v910 = vsel %vm846, %v810, %v878
        %v911 = vsel %vm847, %v811, %v879
        %v912 = vsel %vm848, %v812, %v880
        %v913 = vsel %vm849, %v813, %v881
        %v914 = vsel %vm850, %v814, %v882
        %v915 = vsel %vm851, %v815, %v883
        %v916 = vsel %vm852, %v816, %v884
        %v917 = vsel %vm853, %v817, %v885
        %v918 = vsel %vm854, %v818, %v886
        %v919 = vsel %vm855, %v819, %v887
        %vm920 = vcmask 64512
        %921 = vst.msk [vmem:[%s157] sm:$0xff] %vm920, %v888
        %922 = vst.msk [vmem:[%s157 + $0x8] sm:$0xff] %vm920, %v889
        %923 = vst.msk [vmem:[%s157 + $0x10] sm:$0xff] %vm920, %v890
        %924 = vst.msk [vmem:[%s157 + $0x18] sm:$0xff] %vm920, %v891
        %925 = vst.msk [vmem:[%s157 + $0x20] sm:$0xff] %vm920, %v892
        %926 = vst.msk [vmem:[%s157 + $0x28] sm:$0xff] %vm920, %v893
        %927 = vst.msk [vmem:[%s157 + $0x30] sm:$0xff] %vm920, %v894
        %928 = vst.msk [vmem:[%s157 + $0x38] sm:$0xff] %vm920, %v895
        %929 = vst.msk [vmem:[%s157 + $0x40] sm:$0xff] %vm920, %v896
        %930 = vst.msk [vmem:[%s157 + $0x48] sm:$0xff] %vm920, %v897
        %931 = vst.msk [vmem:[%s157 + $0x50] sm:$0xff] %vm920, %v898
        %932 = vst.msk [vmem:[%s157 + $0x58] sm:$0xff] %vm920, %v899
        %933 = vst.msk [vmem:[%s157 + $0x60] sm:$0xff] %vm920, %v900
        %934 = vst.msk [vmem:[%s157 + $0x68] sm:$0xff] %vm920, %v901
        %935 = vst.msk [vmem:[%s157 + $0x70] sm:$0xff] %vm920, %v902
        %936 = vst.msk [vmem:[%s157 + $0x78] sm:$0xff] %vm920, %v903
        %937 = vst.msk [vmem:[%s157 + $0x80] sm:$0xff] %vm920, %v904
        %938 = vst.msk [vmem:[%s157 + $0x88] sm:$0xff] %vm920, %v905
        %939 = vst.msk [vmem:[%s157 + $0x90] sm:$0xff] %vm920, %v906
        %940 = vst.msk [vmem:[%s157 + $0x98] sm:$0xff] %vm920, %v907
        %941 = vst.msk [vmem:[%s157 + $0xa0] sm:$0xff] %vm920, %v908
        %942 = vst.msk [vmem:[%s157 + $0xa8] sm:$0xff] %vm920, %v909
        %943 = vst.msk [vmem:[%s157 + $0xb0] sm:$0xff] %vm920, %v910
        %944 = vst.msk [vmem:[%s157 + $0xb8] sm:$0xff] %vm920, %v911
        %945 = vst.msk [vmem:[%s157 + $0xc0] sm:$0xff] %vm920, %v912
        %946 = vst.msk [vmem:[%s157 + $0xc8] sm:$0xff] %vm920, %v913
        %947 = vst.msk [vmem:[%s157 + $0xd0] sm:$0xff] %vm920, %v914
        %948 = vst.msk [vmem:[%s157 + $0xd8] sm:$0xff] %vm920, %v915
        %949 = vst.msk [vmem:[%s157 + $0xe0] sm:$0xff] %vm920, %v916
        %950 = vst.msk [vmem:[%s157 + $0xe8] sm:$0xff] %vm920, %v917
        %951 = vst.msk [vmem:[%s157 + $0xf0] sm:$0xff] %vm920, %v918
        %952 = vst.msk [vmem:[%s157 + $0xf8] sm:$0xff] %vm920, %v919
      $region32: #{tpu_custom_call.1} parent=27 // pred_fallthru
        _
      %s953 = smul.u32 32, %s18
      %p954 = scmp.lt.s32.totalorder %s953, 63
      %s955 = scalar_select %p954, %s953, 63
      %s956 = smul.addr %s955, 8
      %s957 = scalar_lea.vmem %s2, %s956
      // Predicated region
      $region33: #{tpu_custom_call.1} parent=27 // pred_check
        %p958 = pneg %p90
      $region34: #{tpu_custom_call.1} parent=27 // pred_check_branch
        %960 = sbr.rel (%p958) target = $region36
      $region35: #{tpu_custom_call.1} parent=27 // pred_region
        %s961 = smul.u32 32, %s18
      $region36: #{tpu_custom_call.1} parent=27 // pred_fallthru
        _
    $region28: #{tpu_custom_call.1} parent=5 // pred_fallthru
      _
    %p962 = scmp.le.s32.totalorder 2, %s8
    // Predicated region
    $region37: #{tpu_custom_call.1} parent=5 // pred_check
      %p963 = pneg %p962
    $region38: #{tpu_custom_call.1} parent=5 // pred_check_branch
      %965 = sbr.rel (%p963) target = $region40
    $region39: #{tpu_custom_call.1} parent=5 // pred_region
      %s966 = ssub.s32 %s8, 2
      // Predicated region
      $region41: #{tpu_custom_call.1} parent=39 // pred_check
        %p967 = pneg %p96
      $region42: #{tpu_custom_call.1} parent=39 // pred_check_branch
        %969 = sbr.rel (%p967) target = $region44
      $region43: #{tpu_custom_call.1} parent=39 // pred_region
        %s970 = smul.u32 32, %s20
        %p971 = scmp.lt.s32.totalorder %s970, 63
        %s972 = scalar_select %p971, %s970, 63
        %s973 = smul.addr %s972, 8
        %s974 = scalar_lea.vmem %s2, %s973
      $region44: #{tpu_custom_call.1} parent=39 // pred_fallthru
        _
    $region40: #{tpu_custom_call.1} parent=5 // pred_fallthru
      _
  $region6: #{tpu_custom_call.1} parent=0 // loop_footer
    %s12 = sadd.s32 1, %s8
  $region7: #{tpu_custom_call.1} parent=0 // loop_footer_branch
    %7 = sbr.rel target = $region3
  $region8: #{tpu_custom_call.1} parent=0 // loop_exit
    _

</llo_original>
